<compile_context>
chip_gen: v6e
topology: v6e:2x2x1
jax: 0.10.0
libtpu: 0.0.40
codegen_flags: <defaults>
</compile_context>

<pallas_src>
import functools
import math

import jax
import jax.numpy as jnp
from jax.experimental import pallas as pl
from jax.experimental.pallas import tpu as pltpu


def _make_divisible(v, divisor, min_value=None):
    if min_value is None:
        min_value = divisor
    new_v = max(min_value, int(v + divisor / 2) // divisor * divisor)
    if new_v < 0.9 * v:
        new_v += divisor
    return new_v


def _round_up(v, m):
    return (v + m - 1) // m * m


def _se_kernel(x_ref, w1v_ref, b1v_ref, w2v_ref, b2v_ref, o_ref, *,
               inv_hw, C, R, G):
    # x_ref:   (TM, HW)      TM = tb*C rows (tb whole batch elements), lanes = H*W
    # w1v_ref: (1, R, HID)   row u = W1[:, u % C]  (first Linear, transposed)
    # b1v_ref: (1, 1, HID)
    # w2v_ref: (1, R, HID)   row u = W2[u % C, :]  (second Linear)
    # b2v_ref: (1, R, 1)     row u = b2[u % C]
    # o_ref:   (TM, HW)
    #
    # R = C  (G = 1) when C % 8 == 0 (tile-aligned regroup) or as generic fallback.
    # R = 8  (G = 8 // C) when C divides 8: each 8-sublane slab holds G batch groups
    #        and the group sums are done with masked sublane reductions (no
    #        unaligned reshapes, no cross-lane selector matmuls).
    TM = x_ref.shape[0]
    HID = w1v_ref.shape[-1]
    nslab = TM // R

    # ---- Squeeze: per-(b,c) spatial mean; f32 accumulation fused into the reduce.
    y = jnp.sum(x_ref[...], axis=-1, keepdims=True, dtype=jnp.float32) * inv_hw  # (TM,1)

    # ---- Excite, in R-row group space (all tensors here are tiny vs. the x block).
    yv = y.reshape(nslab, R, 1)                                    # pure vreg regroup
    pv = yv * w1v_ref[...].astype(jnp.float32)                     # (nslab, R, HID)
    b1v = b1v_ref[...].astype(jnp.float32)                         # (1, 1, HID)
    w2v = w2v_ref[...].astype(jnp.float32)                         # (1, R, HID)
    b2v = b2v_ref[...].astype(jnp.float32)                         # (1, R, 1)

    if G == 1:
        # One batch group per R-row slab: plain sublane reduce.
        h = jnp.sum(pv, axis=1, keepdims=True) + b1v               # (nslab, 1, HID)
        h = h * jax.nn.sigmoid(h)                                  # SiLU
        zv = jnp.sum(h * w2v, axis=-1, keepdims=True) + b2v        # (nslab, R, 1)
    else:
        # G batch groups per 8-row slab: masked sublane reductions per group.
        u = jax.lax.broadcasted_iota(jnp.int32, (nslab, R, HID), 1)
        hv = jnp.zeros((nslab, R, HID), jnp.float32)
        for k in range(G):                                         # G <= 8, static unroll
            msk = (u >= k * C) & (u < (k + 1) * C)
            hk = jnp.sum(jnp.where(msk, pv, 0.0), axis=1, keepdims=True) + b1v
            hk = hk * jax.nn.sigmoid(hk)                           # SiLU, (nslab,1,HID)
            hv = jnp.where(msk, hk, hv)                            # broadcast back to rows
        zv = jnp.sum(hv * w2v, axis=-1, keepdims=True) + b2v       # (nslab, R, 1)

    gate = jax.nn.sigmoid(zv).reshape(TM, 1).astype(o_ref.dtype)   # per-row gate

    # ---- Scale: re-read x from VMEM (keeps vreg pressure low) and broadcast
    #      the gate over the (lane-dense) spatial axis.
    o_ref[...] = x_ref[...] * gate


def se_layer(x, w1, b1, w2, b2, *, block_vmem_bytes=None, donate_x=False):
    """x: (B, C, H, W). w1: (HID, C), b1: (HID,), w2: (C, HID), b2: (C,)."""
    B, C, H, W = x.shape
    HID = w1.shape[0]
    HW = H * W
    dt = x.dtype
    itemsize = jnp.dtype(dt).itemsize

    # Group-space packing: R rows per slab, G batch groups per slab.
    if C < 8 and 8 % C == 0:
        R, G = 8, 8 // C          # tile-aligned supergroups (e.g. toy C=4)
    else:
        R, G = C, 1               # C % 8 == 0 -> aligned; otherwise generic fallback

    # ---- Per-generation block sizing + honest VMEM accounting. ----
    try:
        vmem_cap = int(getattr(pltpu.get_tpu_info(), "vmem_capacity_bytes",
                               64 * 2 ** 20))
    except Exception:  # pragma: no cover - conservative fallback off-TPU / old jax
        vmem_cap = 64 * 2 ** 20

    row_vmem = _round_up(HW, 128) * itemsize            # VMEM bytes per (b,c) row
    aux_per_row = 4 * 512 * (-(-HID // 128))            # f32, vreg-padded excite temps
    tb_unit = 8 // math.gcd(C, 8)                       # smallest tb with (tb*C) % 8 == 0

    budget = max(24 * 2 ** 20, vmem_cap // 2)           # total VMEM we aim to use
    if block_vmem_bytes is not None:
        budget = 4 * block_vmem_bytes
    cost_per_batch = C * (4 * row_vmem + aux_per_row)   # in+out double-buffered + temps
    tb_cap = max(tb_unit, (budget // max(1, cost_per_batch)) // tb_unit * tb_unit)

    # >= 2 grid steps when B allows it (v7x megacore); minimise final-block overhang.
    n_steps = max(pl.cdiv(B, tb_cap), 2 if B >= 2 * tb_unit else 1)
    tb = min(_round_up(pl.cdiv(B, n_steps), tb_unit), _round_up(B, tb_unit))
    grid = pl.cdiv(B, tb)
    TM = tb * C
    # Note: grid*tb may exceed B by < tb batches.  No host-side zero-pad is done;
    # Pallas' boundary masking drops the out-of-range output rows and the garbage
    # it reads there only affects those (discarded) batch groups.
    # TODO(synk): a single batch larger than the VMEM budget (huge C*H*W) would
    # need an extra grid axis over channel groups; not handled here.

    x2 = x.reshape(B * C, HW)     # free (contiguous) reshape — no pad, no copy

    # Tiny excite constants, O(C*HID) in f32 (no per-row tiling, no selectors).
    w1f = w1.astype(jnp.float32)
    w2f = w2.astype(jnp.float32)
    w1v = jnp.tile(w1f.T, (G, 1)).reshape(1, R, HID)    # row u = W1[:, u % C]
    w2v = jnp.tile(w2f, (G, 1)).reshape(1, R, HID)      # row u = W2[u % C, :]
    b1v = b1.astype(jnp.float32).reshape(1, 1, HID)
    b2v = jnp.tile(b2.astype(jnp.float32), G).reshape(1, R, 1)

    block_bytes = TM * row_vmem
    const_bytes = 2 * 4 * (w1v.size + w2v.size + b1v.size + b2v.size)
    vmem_limit = 4 * block_bytes + TM * aux_per_row + const_bytes + 2 * 2 ** 20
    vmem_limit = int(min(max(vmem_limit, 16 * 2 ** 20),
                         max(16 * 2 ** 20, vmem_cap - 4 * 2 ** 20)))

    kernel = functools.partial(_se_kernel, inv_hw=1.0 / HW, C=C, R=R, G=G)

    out2 = pl.pallas_call(
        kernel,
        out_shape=jax.ShapeDtypeStruct((B * C, HW), dt),
        grid_spec=pltpu.PrefetchScalarGridSpec(
            num_scalar_prefetch=0,
            grid=(grid,),
            in_specs=[
                pl.BlockSpec((TM, HW), lambda i: (i, 0)),          # x  (full-dim lanes)
                pl.BlockSpec((1, R, HID), lambda i: (0, 0, 0)),    # w1v
                pl.BlockSpec((1, 1, HID), lambda i: (0, 0, 0)),    # b1v
                pl.BlockSpec((1, R, HID), lambda i: (0, 0, 0)),    # w2v
                pl.BlockSpec((1, R, 1), lambda i: (0, 0, 0)),      # b2v
            ],
            out_specs=pl.BlockSpec((TM, HW), lambda i: (i, 0)),
        ),
        compiler_params=pltpu.CompilerParams(
            dimension_semantics=("parallel",),
            vmem_limit_bytes=vmem_limit,
        ),
        input_output_aliases=({0: 0} if donate_x else {}),
    )(x2, w1v, b1v, w2v, b2v)

    return out2.reshape(B, C, H, W)   # free reshape back — no slicing


if __name__ == "__main__":
    # Module config: SELayer(inp=4, oup=4, reduction=4) -> hidden = _make_divisible(1, 8) = 8
    inp, oup, reduction = 4, 4, 4
    hidden = _make_divisible(inp // reduction, 8)

    B, C, H, W = 2, oup, 16, 16

    key = jax.random.PRNGKey(0)
    kx, kw1, kb1, kw2, kb2 = jax.random.split(key, 5)

    x = jax.random.normal(kx, (B, C, H, W), dtype=jnp.float32)

    # Deterministic "Linear" params, PyTorch convention: weight (out, in), bias (out,)
    bound1 = 1.0 / math.sqrt(oup)
    w1 = jax.random.uniform(kw1, (hidden, oup), jnp.float32, -bound1, bound1)
    b1 = jax.random.uniform(kb1, (hidden,), jnp.float32, -bound1, bound1)
    bound2 = 1.0 / math.sqrt(hidden)
    w2 = jax.random.uniform(kw2, (oup, hidden), jnp.float32, -bound2, bound2)
    b2 = jax.random.uniform(kb2, (oup,), jnp.float32, -bound2, bound2)

    out = se_layer(x, w1, b1, w2, b2)
    jax.block_until_ready(out)

    # Pure-JAX reference check.
    y_ref = jnp.mean(x, axis=(2, 3))                      # (B, C)
    h_ref = y_ref @ w1.T + b1
    h_ref = h_ref * jax.nn.sigmoid(h_ref)
    s_ref = jax.nn.sigmoid(h_ref @ w2.T + b2)
    ref = x * s_ref[:, :, None, None]
    assert jnp.allclose(out, ref, atol=1e-5, rtol=1e-5), "mismatch vs reference"

    print("KERNEL_OK")
</pallas_src>

<mosaic_0001>
module attributes {stable_mosaic.version = 11 : i64} {
  func.func @_se_kernel(%arg0: i32, %arg1: memref<8x256xf32, #tpu.memory_space<vmem>>, %arg2: memref<1x8x8xf32, #tpu.memory_space<vmem>>, %arg3: memref<1x1x8xf32, #tpu.memory_space<vmem>>, %arg4: memref<1x8x8xf32, #tpu.memory_space<vmem>>, %arg5: memref<1x8x1xf32, #tpu.memory_space<vmem>>, %arg6: memref<8x256xf32, #tpu.memory_space<vmem>>) attributes {dimension_semantics = [#tpu.dimension_semantics<parallel>], iteration_bounds = array<i64: 1>, scalar_prefetch = 0 : i64, scratch_operands = 0 : i64, tpu.core_type = #tpu.core_type<tc>, window_params = [{transform_indices = @transform_0, window_bounds = array<i64: 8, 256>}, {pipeline_mode = #tpu.pipeline_mode<synchronous>, transform_indices = @transform_1, window_bounds = array<i64: 1, 8, 8>}, {pipeline_mode = #tpu.pipeline_mode<synchronous>, transform_indices = @transform_2, window_bounds = array<i64: 1, 1, 8>}, {pipeline_mode = #tpu.pipeline_mode<synchronous>, transform_indices = @transform_3, window_bounds = array<i64: 1, 8, 8>}, {pipeline_mode = #tpu.pipeline_mode<synchronous>, transform_indices = @transform_4, window_bounds = array<i64: 1, 8, 1>}, {transform_indices = @transform_5, window_bounds = array<i64: 8, 256>}]} {
    %c0 = arith.constant 0 : index
    %c0_0 = arith.constant 0 : index
    %0 = vector.load %arg1[%c0, %c0_0] : memref<8x256xf32, #tpu.memory_space<vmem>>, vector<8x256xf32>
    %cst = arith.constant dense<0.000000e+00> : vector<8xf32>
    %1 = vector.multi_reduction <add>, %0, %cst [1] : vector<8x256xf32> to vector<8xf32>
    %2 = vector.shape_cast %1 : vector<8xf32> to vector<8x1xf32>
    %cst_1 = arith.constant 3.906250e-03 : f32
    %3 = vector.broadcast %cst_1 : f32 to vector<8x1xf32>
    %4 = arith.mulf %2, %3 : vector<8x1xf32>
    %5 = vector.shape_cast %4 : vector<8x1xf32> to vector<1x8x1xf32>
    %c0_2 = arith.constant 0 : index
    %c0_3 = arith.constant 0 : index
    %c0_4 = arith.constant 0 : index
    %6 = vector.load %arg2[%c0_2, %c0_3, %c0_4] : memref<1x8x8xf32, #tpu.memory_space<vmem>>, vector<1x8x8xf32>
    %7 = vector.broadcast %5 : vector<1x8x1xf32> to vector<1x8x8xf32>
    %8 = arith.mulf %7, %6 : vector<1x8x8xf32>
    %c0_5 = arith.constant 0 : index
    %c0_6 = arith.constant 0 : index
    %c0_7 = arith.constant 0 : index
    %9 = vector.load %arg3[%c0_5, %c0_6, %c0_7] : memref<1x1x8xf32, #tpu.memory_space<vmem>>, vector<1x1x8xf32>
    %c0_8 = arith.constant 0 : index
    %c0_9 = arith.constant 0 : index
    %c0_10 = arith.constant 0 : index
    %10 = vector.load %arg4[%c0_8, %c0_9, %c0_10] : memref<1x8x8xf32, #tpu.memory_space<vmem>>, vector<1x8x8xf32>
    %c0_11 = arith.constant 0 : index
    %c0_12 = arith.constant 0 : index
    %c0_13 = arith.constant 0 : index
    %11 = vector.load %arg5[%c0_11, %c0_12, %c0_13] : memref<1x8x1xf32, #tpu.memory_space<vmem>>, vector<1x8x1xf32>
    %12 = tpu.iota {dimensions = array<i32: 1>} : vector<1x8x8xi32>
    %cst_14 = arith.constant 0.000000e+00 : f32
    %13 = vector.broadcast %cst_14 : f32 to vector<1x8x8xf32>
    %c0_i32 = arith.constant 0 : i32
    %14 = vector.broadcast %c0_i32 : i32 to vector<1x8x8xi32>
    %15 = arith.cmpi sge, %12, %14 : vector<1x8x8xi32>
    %c4_i32 = arith.constant 4 : i32
    %16 = vector.broadcast %c4_i32 : i32 to vector<1x8x8xi32>
    %17 = arith.cmpi slt, %12, %16 : vector<1x8x8xi32>
    %18 = arith.andi %15, %17 : vector<1x8x8xi1>
    %cst_15 = arith.constant 0.000000e+00 : f32
    %19 = vector.broadcast %cst_15 : f32 to vector<1x8x8xf32>
    %20 = arith.select %18, %8, %19 : vector<1x8x8xi1>, vector<1x8x8xf32>
    %cst_16 = arith.constant dense<0.000000e+00> : vector<1x8xf32>
    %21 = vector.multi_reduction <add>, %20, %cst_16 [1] : vector<1x8x8xf32> to vector<1x8xf32>
    %22 = vector.shape_cast %21 : vector<1x8xf32> to vector<1x1x8xf32>
    %23 = arith.addf %22, %9 : vector<1x1x8xf32>
    %24 = arith.negf %23 : vector<1x1x8xf32>
    %25 = math.exp %24 : vector<1x1x8xf32>
    %cst_17 = arith.constant 1.000000e+00 : f32
    %26 = vector.broadcast %cst_17 : f32 to vector<1x1x8xf32>
    %27 = arith.addf %26, %25 : vector<1x1x8xf32>
    %28 = arith.divf %26, %27 : vector<1x1x8xf32>
    %29 = arith.mulf %23, %28 : vector<1x1x8xf32>
    %30 = vector.shape_cast %29 : vector<1x1x8xf32> to vector<1x1x8xf32>
    %31 = vector.broadcast %30 : vector<1x1x8xf32> to vector<1x8x8xf32>
    %32 = arith.select %18, %31, %13 : vector<1x8x8xi1>, vector<1x8x8xf32>
    %c4_i32_18 = arith.constant 4 : i32
    %33 = vector.broadcast %c4_i32_18 : i32 to vector<1x8x8xi32>
    %34 = arith.cmpi sge, %12, %33 : vector<1x8x8xi32>
    %c8_i32 = arith.constant 8 : i32
    %35 = vector.broadcast %c8_i32 : i32 to vector<1x8x8xi32>
    %36 = arith.cmpi slt, %12, %35 : vector<1x8x8xi32>
    %37 = arith.andi %34, %36 : vector<1x8x8xi1>
    %cst_19 = arith.constant 0.000000e+00 : f32
    %38 = vector.broadcast %cst_19 : f32 to vector<1x8x8xf32>
    %39 = arith.select %37, %8, %38 : vector<1x8x8xi1>, vector<1x8x8xf32>
    %cst_20 = arith.constant dense<0.000000e+00> : vector<1x8xf32>
    %40 = vector.multi_reduction <add>, %39, %cst_20 [1] : vector<1x8x8xf32> to vector<1x8xf32>
    %41 = vector.shape_cast %40 : vector<1x8xf32> to vector<1x1x8xf32>
    %42 = arith.addf %41, %9 : vector<1x1x8xf32>
    %43 = arith.negf %42 : vector<1x1x8xf32>
    %44 = math.exp %43 : vector<1x1x8xf32>
    %cst_21 = arith.constant 1.000000e+00 : f32
    %45 = vector.broadcast %cst_21 : f32 to vector<1x1x8xf32>
    %46 = arith.addf %45, %44 : vector<1x1x8xf32>
    %47 = arith.divf %45, %46 : vector<1x1x8xf32>
    %48 = arith.mulf %42, %47 : vector<1x1x8xf32>
    %49 = vector.shape_cast %48 : vector<1x1x8xf32> to vector<1x1x8xf32>
    %50 = vector.broadcast %49 : vector<1x1x8xf32> to vector<1x8x8xf32>
    %51 = arith.select %37, %50, %32 : vector<1x8x8xi1>, vector<1x8x8xf32>
    %52 = arith.mulf %51, %10 : vector<1x8x8xf32>
    %cst_22 = arith.constant dense<0.000000e+00> : vector<1x8xf32>
    %53 = vector.multi_reduction <add>, %52, %cst_22 [2] : vector<1x8x8xf32> to vector<1x8xf32>
    %54 = vector.shape_cast %53 : vector<1x8xf32> to vector<1x8x1xf32>
    %55 = arith.addf %54, %11 : vector<1x8x1xf32>
    %56 = arith.negf %55 : vector<1x8x1xf32>
    %57 = math.exp %56 : vector<1x8x1xf32>
    %cst_23 = arith.constant 1.000000e+00 : f32
    %58 = vector.broadcast %cst_23 : f32 to vector<1x8x1xf32>
    %59 = arith.addf %58, %57 : vector<1x8x1xf32>
    %60 = arith.divf %58, %59 : vector<1x8x1xf32>
    %61 = vector.shape_cast %60 : vector<1x8x1xf32> to vector<8x1xf32>
    %c0_24 = arith.constant 0 : index
    %c0_25 = arith.constant 0 : index
    %62 = vector.load %arg1[%c0_24, %c0_25] : memref<8x256xf32, #tpu.memory_space<vmem>>, vector<8x256xf32>
    %63 = vector.broadcast %61 : vector<8x1xf32> to vector<8x256xf32>
    %64 = arith.mulf %62, %63 : vector<8x256xf32>
    %c0_26 = arith.constant 0 : index
    %c0_27 = arith.constant 0 : index
    %65 = vector.load %arg6[%c0_26, %c0_27] : memref<8x256xf32, #tpu.memory_space<vmem>>, vector<8x256xf32>
    tpu.vector_store %arg6[%c0_26, %c0_27], %64 {strides = array<i32>} : memref<8x256xf32, #tpu.memory_space<vmem>>, vector<8x256xf32>,
    return
  }
  func.func @transform_0(%arg0: i32) -> (i32, i32) {
    %c0_i32 = arith.constant 0 : i32
    %c0_i32_0 = arith.constant 0 : i32
    return %arg0, %c0_i32 : i32, i32
  }
  func.func @transform_1(%arg0: i32) -> (i32, i32, i32) {
    %c0_i32 = arith.constant 0 : i32
    %c0_i32_0 = arith.constant 0 : i32
    %c0_i32_1 = arith.constant 0 : i32
    %c0_i32_2 = arith.constant 0 : i32
    return %c0_i32, %c0_i32_0, %c0_i32_1 : i32, i32, i32
  }
  func.func @transform_2(%arg0: i32) -> (i32, i32, i32) {
    %c0_i32 = arith.constant 0 : i32
    %c0_i32_0 = arith.constant 0 : i32
    %c0_i32_1 = arith.constant 0 : i32
    %c0_i32_2 = arith.constant 0 : i32
    return %c0_i32, %c0_i32_0, %c0_i32_1 : i32, i32, i32
  }
  func.func @transform_3(%arg0: i32) -> (i32, i32, i32) {
    %c0_i32 = arith.constant 0 : i32
    %c0_i32_0 = arith.constant 0 : i32
    %c0_i32_1 = arith.constant 0 : i32
    %c0_i32_2 = arith.constant 0 : i32
    return %c0_i32, %c0_i32_0, %c0_i32_1 : i32, i32, i32
  }
  func.func @transform_4(%arg0: i32) -> (i32, i32, i32) {
    %c0_i32 = arith.constant 0 : i32
    %c0_i32_0 = arith.constant 0 : i32
    %c0_i32_1 = arith.constant 0 : i32
    %c0_i32_2 = arith.constant 0 : i32
    return %c0_i32, %c0_i32_0, %c0_i32_1 : i32, i32, i32
  }
  func.func @transform_5(%arg0: i32) -> (i32, i32) {
    %c0_i32 = arith.constant 0 : i32
    %c0_i32_0 = arith.constant 0 : i32
    return %arg0, %c0_i32 : i32, i32
  }
}

</mosaic_0001>

<llo_original>
// kernel: tpu_custom_call.1
$region0: #{tpu_custom_call.1}
  #allocation0 [shape = 'u32[]', space=smem, size = 0x4, offset = 0x4, fixed_abs, tag = 'smem constant byte address 0x4 - core index']
  #allocation1 [shape = 'u32[144,128]{1,0:T(1,128)}', space=vmem, size = 0x12000, scoped, tag = 'internal scratch']
  %s0 = inlined_call_operand.hbm [shape: f32[8,256], index: 0, kind: input, shape index: {}]
  %s1 = inlined_call_operand.vmem [shape: f32[1,8,8], index: 1, kind: input, shape index: {}]
  %s2 = inlined_call_operand.vmem [shape: f32[1,1,8], index: 2, kind: input, shape index: {}]
  %s3 = inlined_call_operand.hbm [shape: f32[1,8,8], index: 3, kind: input, shape index: {}]
  %s4 = inlined_call_operand.vmem [shape: f32[1,8,1], index: 4, kind: input, shape index: {}]
  %s5 = inlined_call_operand.hbm [shape: f32[8,256], index: 5, kind: output, shape index: {}]
  %s6 = sld [smem:[#allocation0]]
  $region38: #{tpu_custom_call.1} parent=0
    _
  %s8 = ssub.s32 1, %s6
  %s9 = scalar_select 0, %s8, %s6
  $region1: #{tpu_custom_call.1} parent=0
    #allocation2 [shape = 'u8[8192]{0}', space=vmem, size = 0x2000, scoped, tag = 'input window, operand 0, single buffered']
    #allocation3 [shape = 's32[1]{0}', space=sflag, size = 0x4, scoped, tag = 'scoped memory for tpu_custom_call.1']
    #allocation4 [shape = 's32[1]{0}', space=sflag, size = 0x4, scoped, tag = 'scoped memory for tpu_custom_call.1']
    #allocation5 [shape = 'u8[4096]{0}', space=vmem, size = 0x1000, scoped, tag = 'input window, operand 3, single buffered']
    #allocation6 [shape = 's32[1]{0}', space=sflag, size = 0x4, scoped, tag = 'scoped memory for tpu_custom_call.1']
    #allocation7 [shape = 'u8[8192]{0}', space=vmem, size = 0x2000, scoped, tag = 'output window, operand 0, single buffered']
    %10 = vsyncpa [#allocation3], 0
    %11 = vsyncpa [#allocation6], 0
    %12 = vsyncpa [#allocation4], 0
    // Predicated region
    $region2: #{tpu_custom_call.1} parent=1 // pred_check
      _
    $region3: #{tpu_custom_call.1} parent=1 // pred_check_branch
      %14 = sbr.rel (0) target = $region5
    $region4: #{tpu_custom_call.1} parent=1 // pred_region
      %s16 = ssub.s32 256, 256
      %17 = vsyncadd [#allocation3], %s16
      %s19 = sshll.u32 [#allocation2], 4
      %s20 = int_to_ptr.vmem [resolvable:$true] %s19
      %22 = dma.hbm_to_vmem [thread:$0]  %s0, 256, %s20, [#allocation3]
    $region5: #{tpu_custom_call.1} parent=1 // pred_fallthru
      _
    // Predicated region
    $region6: #{tpu_custom_call.1} parent=1 // pred_check
      _
    $region7: #{tpu_custom_call.1} parent=1 // pred_check_branch
      %24 = sbr.rel (0) target = $region9
    $region8: #{tpu_custom_call.1} parent=1 // pred_region
      _
    $region9: #{tpu_custom_call.1} parent=1 // pred_fallthru
      _
    // Predicated region
    $region10: #{tpu_custom_call.1} parent=1 // pred_check
      _
    $region11: #{tpu_custom_call.1} parent=1 // pred_check_branch
      %26 = sbr.rel (0) target = $region13
    $region12: #{tpu_custom_call.1} parent=1 // pred_region
      _
    $region13: #{tpu_custom_call.1} parent=1 // pred_fallthru
      _
    // Predicated region
    $region14: #{tpu_custom_call.1} parent=1 // pred_check
      _
    $region15: #{tpu_custom_call.1} parent=1 // pred_check_branch
      %28 = sbr.rel (0) target = $region17
    $region16: #{tpu_custom_call.1} parent=1 // pred_region
      %s30 = ssub.s32 128, 128
      %31 = vsyncadd [#allocation6], %s30
      %s33 = sshll.u32 [#allocation5], 4
      %s34 = int_to_ptr.vmem [resolvable:$true] %s33
      %36 = dma.hbm_to_vmem [thread:$0]  %s3, 128, %s34, [#allocation6]
    $region17: #{tpu_custom_call.1} parent=1 // pred_fallthru
      _
    // Predicated region
    $region18: #{tpu_custom_call.1} parent=1 // pred_check
      _
    $region19: #{tpu_custom_call.1} parent=1 // pred_check_branch
      %38 = sbr.rel (0) target = $region21
    $region20: #{tpu_custom_call.1} parent=1 // pred_region
      _
    $region21: #{tpu_custom_call.1} parent=1 // pred_fallthru
      _
    // Predicated region
    $region22: #{tpu_custom_call.1} parent=1 // pred_check
      _
    $region23: #{tpu_custom_call.1} parent=1 // pred_check_branch
      %40 = sbr.rel (0) target = $region25
    $region24: #{tpu_custom_call.1} parent=1 // pred_region
      %41 = dma.done [#allocation3], 256
    $region25: #{tpu_custom_call.1} parent=1 // pred_fallthru
      _
    // Predicated region
    $region26: #{tpu_custom_call.1} parent=1 // pred_check
      _
    $region27: #{tpu_custom_call.1} parent=1 // pred_check_branch
      %43 = sbr.rel (0) target = $region29
    $region28: #{tpu_custom_call.1} parent=1 // pred_region
      %44 = dma.done [#allocation6], 128
    $region29: #{tpu_custom_call.1} parent=1 // pred_fallthru
      _
    %v45 = vld [vmem:[#allocation2] sm:$0xff]
    %v46 = vld [vmem:[#allocation2 + $0x8] sm:$0xff]
    %v47 = vadd.f32 %v45, %v46
    %48 = vadd.xlane.f32.xlu0 %v47
    %v49 = vpop.xlane.xlu0 %48
    %v50 = vmul.f32 %v49, 0.00390625
    %v51 = vld [vmem:[%s1] sm:$0xff]
    %v52 = vmul.f32 %v50, %v51
    %v53 = vld [vmem:[%s2] sm:$0x1]
    %v54 = vld [vmem:[#allocation5] sm:$0xff]
    %v55 = vld [vmem:[%s4] sm:$0xff]
    %v56 = vlaneseq
    %v57 = vshrl.u32 %v56, 7
    %vm58 = vcmp.ge.s32.totalorder %v57, 0
    %vm59 = vcmp.lt.s32.totalorder %v57, 4
    %vm60 = vmand %vm58, %vm59
    %v61 = vsel %vm60, %v52, 0.0
    %vm62 = vcmask 64512
    %v63 = vsel %vm62, %v61, 0.0
    %v64 = vrot.slane %v63, 4
    %v65 = vadd.f32 %v63, %v64
    %v66 = vrot.slane %v65, 2
    %v67 = vadd.f32 %v65, %v66
    %v68 = vrot.slane %v67, 1
    %v69 = vadd.f32 %v67, %v68
    %v70 = vadd.f32 %v69, %v53
    %v71 = vxor.u32 %v70, 2147483648
    %v72 = vmul.f32 %v71, 1.442695
    %v73 = vpow.pop %v72
    %v74 = vadd.f32 %v73, 1.0
    %v75 = vrcp.pop %v74
    %v76 = vmul.f32 1.0, %v75
    %v77 = vmul.f32 %v70, %v76
    %v78 = vlaneseq
    %v79 = vshrl.u32 %v78, 7
    %v80 = vsub.s32 0, %v79
    %v81 = vrot.slane %v77, %v80
    %v82 = vsel %vm60, %v81, 0.0
    %vm83 = vcmp.ge.s32.totalorder %v57, 4
    %vm84 = vcmp.lt.s32.totalorder %v57, 8
    %vm85 = vmand %vm83, %vm84
    %v86 = vsel %vm85, %v52, 0.0
    %v87 = vsel %vm62, %v86, 0.0
    %v88 = vrot.slane %v87, 4
    %v89 = vadd.f32 %v87, %v88
    %v90 = vrot.slane %v89, 2
    %v91 = vadd.f32 %v89, %v90
    %v92 = vrot.slane %v91, 1
    %v93 = vadd.f32 %v91, %v92
    %v94 = vadd.f32 %v93, %v53
    %v95 = vxor.u32 %v94, 2147483648
    %v96 = vmul.f32 %v95, 1.442695
    %v97 = vpow.pop %v96
    %v98 = vadd.f32 %v97, 1.0
    %v99 = vrcp.pop %v98
    %v100 = vmul.f32 1.0, %v99
    %v101 = vmul.f32 %v94, %v100
    %v102 = vlaneseq
    %v103 = vshrl.u32 %v102, 7
    %v104 = vsub.s32 0, %v103
    %v105 = vrot.slane %v101, %v104
    %v106 = vsel %vm85, %v105, %v82
    %v107 = vmul.f32 %v106, %v54
    %v108 = vsel %vm62, %v107, 0.0
    %109 = vadd.xlane.f32.xlu0 %v108
    %v110 = vpop.xlane.xlu0 %109
    %v111 = vadd.f32 %v110, %v55
    %v112 = vxor.u32 %v111, 2147483648
    %v113 = vmul.f32 %v112, 1.442695
    %v114 = vpow.pop %v113
    %v115 = vadd.f32 %v114, 1.0
    %v116 = vrcp.pop %v115
    %v117 = vmul.f32 1.0, %v116
    %119 = vset.pattern.permute.xlu0 0
    %120 = vperm.xlu0 %119, %v117
    %v121 = vpop.permute.xlu0 %120
    %v123 = vmul.f32 %v45, %v121
    %v124 = vmul.f32 %v46, %v121
    %125 = vst [vmem:[#allocation7] sm:$0xff] %v123
    %126 = vst [vmem:[#allocation7 + $0x8] sm:$0xff] %v124
    // Predicated region
    $region30: #{tpu_custom_call.1} parent=1 // pred_check
      _
    $region31: #{tpu_custom_call.1} parent=1 // pred_check_branch
      %128 = sbr.rel (0) target = $region33
    $region32: #{tpu_custom_call.1} parent=1 // pred_region
      %s130 = ssub.s32 256, 256
      %131 = vsyncadd [#allocation4], %s130
      %s133 = sshll.u32 [#allocation7], 4
      %s134 = int_to_ptr.vmem [resolvable:$true] %s133
      %136 = dma.vmem_to_hbm [thread:$0]  %s134, 256, %s5, [#allocation4]
    $region33: #{tpu_custom_call.1} parent=1 // pred_fallthru
      _
    // Predicated region
    $region34: #{tpu_custom_call.1} parent=1 // pred_check
      _
    $region35: #{tpu_custom_call.1} parent=1 // pred_check_branch
      %138 = sbr.rel (0) target = $region37
    $region36: #{tpu_custom_call.1} parent=1 // pred_region
      %139 = dma.done [#allocation4], 256
    $region37: #{tpu_custom_call.1} parent=1 // pred_fallthru
      _
    %140 = vsyncpa [#allocation3], 1
    %141 = vsyncpa [#allocation6], 1
    %142 = vsyncpa [#allocation4], 1

</llo_original>
